<compile_context>
chip_gen: v7x
topology: tpu7x:2x2x1
jax: 0.10.0
libtpu: 0.0.40
codegen_flags: <defaults>
</compile_context>

<pallas_src>
import functools

import jax
import jax.numpy as jnp
from jax.experimental import pallas as pl
from jax.experimental.pallas import tpu as pltpu


def _gcn_kernel(x_ref, g_ref, f_ref, w_ref, out_ref, *,
                n_nodes, n_feat, gpad, emb):
    """One grid step = one independent graph-batch.

    x_ref : [N, F]            f32   raw node features (pad folded into W_fold)
    g_ref : [N + 2*Gpad, N]   bf16  rows 0:N = A_fold = A_hat^num_convs,
                                    rows N:  = add-pool / mean-pool (zero-padded to Gpad)
    f_ref : [N + 2, L]        f32   rows 0:N = B_fold (folded conv bias),
                                    row  N   = b1, row N+1 = b2 (lane-padded to L>=128)
    w_ref : [4E, L]           bf16  [W_fold ; W1a ; W1b ; W2pad] (lane-padded)
    out   : [Gpad, L]         f32   lane-dense, fully unmasked store
    """
    n, f, e, gp = n_nodes, n_feat, emb, gpad

    a_fold = g_ref[0:n, :]                        # [N, N]    bf16
    pools = g_ref[n:n + 2 * gp, :]                # [2Gp, N]  bf16
    b_fold = f_ref[0:n, 0:e]                      # [N, E]    f32
    b1 = f_ref[n:n + 1, 0:e]                      # [1, E]    f32
    b2 = f_ref[n + 1:n + 2, :]                    # [1, L]    f32
    w_fold = w_ref[0:f, 0:e]                      # [F, E]    bf16 (pad fold: only F rows)
    w1a = w_ref[e:2 * e, 0:e]                     # [E, E]
    w1b = w_ref[2 * e:3 * e, 0:e]                 # [E, E]
    w2 = w_ref[3 * e:4 * e, :]                    # [E, L]    (columns E: are zero)

    # Folded GCNConv stack: h = A_hat^k @ (x_pad @ (W^T)^k) + B_fold.
    # bf16 MXU inputs, f32 accumulation; bias add in f32 on the VPU.
    x = x_ref[...].astype(jnp.bfloat16)           # [N, F]
    hw = jnp.dot(x, w_fold, preferred_element_type=jnp.float32)          # [N, E]
    h = jnp.dot(a_fold, hw.astype(jnp.bfloat16),
                preferred_element_type=jnp.float32) + b_fold             # [N, E] f32
    h = h.astype(jnp.bfloat16)

    # Global add + mean pooling in one MXU push (stacked, Gpad-padded rows).
    pooled = jnp.dot(pools, h, preferred_element_type=jnp.float32)       # [2Gp, E]
    add_p = pooled[0:gp, :].astype(jnp.bfloat16)
    mean_p = pooled[gp:2 * gp, :].astype(jnp.bfloat16)

    # post_mp layer 0: Linear(2E, E) on concat([add, mean]) + ReLU (Dropout p=0).
    z = (jnp.dot(add_p, w1a, preferred_element_type=jnp.float32)
         + jnp.dot(mean_p, w1b, preferred_element_type=jnp.float32) + b1)
    z = jnp.maximum(z, 0.0)

    # post_mp last layer: Linear(E, E); w2 is lane-padded so the MXU output is
    # already lane-dense -> single unmasked store.
    out_ref[...] = jnp.dot(z.astype(jnp.bfloat16), w2,
                           preferred_element_type=jnp.float32) + b2      # [Gp, L]


def build_graph_operators(edge_index, batch_index, num_nodes, num_graphs, gpad):
    """Dense normalized adjacency + Gpad-padded add/mean pooling matrices (f32)."""
    src, dst = edge_index[0], edge_index[1]
    adj = jnp.zeros((num_nodes, num_nodes), jnp.float32).at[dst, src].add(1.0)
    adj = adj + jnp.eye(num_nodes, dtype=jnp.float32)          # add self-loops
    deg = jnp.sum(adj, axis=1)
    dinv = jax.lax.rsqrt(jnp.maximum(deg, 1.0))                # deg >= 1 (self-loops)
    a_hat = dinv[:, None] * adj * dinv[None, :]

    onehot = (batch_index[None, :] == jnp.arange(num_graphs)[:, None]
              ).astype(jnp.float32)                            # [G, N]
    counts = jnp.maximum(jnp.sum(onehot, axis=1, keepdims=True), 1.0)
    add_pool = jnp.zeros((gpad, num_nodes), jnp.float32).at[:num_graphs].set(onehot)
    mean_pool = jnp.zeros((gpad, num_nodes), jnp.float32).at[:num_graphs].set(
        onehot / counts)
    return a_hat, add_pool, mean_pool


def pack_operands(a_hat, add_pool, mean_pool, params, num_convs):
    """One-time packing (out of the per-call hot path).

    Folds the num_convs GCNConv applications (shared weights, no activation):
        h_k = A_hat^k @ x_pad @ (W^T)^k + B_fold,
        B_fold recursion: C_{k+1} = A_hat @ (C_k @ W^T) + 1 b_gcn.
    Returns (gslab bf16 [N+2Gpad, N], fslab f32 [N+2, L], wslab bf16 [4E, L]).
    """
    e = params['w_gcn'].shape[0]
    n = a_hat.shape[0]
    lanes = max(128, ((e + 127) // 128) * 128)

    wt = params['w_gcn'].T                                     # x @ W^T form
    bg = params['b_gcn'][None, :]                              # [1, E]
    a_fold = jnp.eye(n, dtype=jnp.float32)
    w_fold = jnp.eye(e, dtype=jnp.float32)
    b_fold = jnp.zeros((n, e), jnp.float32)
    for _ in range(num_convs):
        a_fold = a_hat @ a_fold
        w_fold = w_fold @ wt
        b_fold = a_hat @ (b_fold @ wt) + jnp.ones((n, 1), jnp.float32) @ bg

    gslab = jnp.concatenate([a_fold, add_pool, mean_pool],
                            axis=0).astype(jnp.bfloat16)       # [N+2Gpad, N]

    fslab = jnp.zeros((n + 2, lanes), jnp.float32)
    fslab = fslab.at[0:n, 0:e].set(b_fold)
    fslab = fslab.at[n, 0:e].set(params['b1'])
    fslab = fslab.at[n + 1, 0:e].set(params['b2'])             # [N+2, L]

    w1t = params['w1'].T                                       # [2E, E]
    wslab = jnp.zeros((4 * e, lanes), jnp.float32)
    wslab = wslab.at[0:e, 0:e].set(w_fold)
    wslab = wslab.at[e:2 * e, 0:e].set(w1t[:e])
    wslab = wslab.at[2 * e:3 * e, 0:e].set(w1t[e:])
    wslab = wslab.at[3 * e:4 * e, 0:e].set(params['w2'].T)     # w2 lane-padded
    wslab = wslab.astype(jnp.bfloat16)                         # [4E, L]
    return gslab, fslab, wslab


@functools.partial(jax.jit, static_argnames=('num_graphs',))
def gcn_forward(x, gslab, fslab, wslab, *, num_graphs):
    """Hot path: one fused pallas_call over B independent graph-batches."""
    bsz, n, f = x.shape
    e = wslab.shape[0] // 4
    gpad = (gslab.shape[1] - n) // 2
    lanes = fslab.shape[2]

    kernel = functools.partial(_gcn_kernel, n_nodes=n, n_feat=f, gpad=gpad, emb=e)
    out = pl.pallas_call(
        kernel,
        out_shape=jax.ShapeDtypeStruct((bsz, gpad, lanes), jnp.float32),
        grid=(bsz,),
        in_specs=[
            pl.BlockSpec((None, n, f), lambda i: (i, 0, 0)),              # x (per batch)
            pl.BlockSpec((None, n + 2 * gpad, n), lambda i: (i, 0, 0)),   # graph slab
            pl.BlockSpec((None, n + 2, lanes), lambda i: (i, 0, 0)),      # f32 slab
            pl.BlockSpec((4 * e, lanes), lambda i: (0, 0)),               # weights (shared)
        ],
        out_specs=pl.BlockSpec((None, gpad, lanes), lambda i: (i, 0, 0)),
        compiler_params=pltpu.CompilerParams(
            dimension_semantics=("parallel",),     # shards batch axis across v7x's 2 TCs
            vmem_limit_bytes=4 * 1024 * 1024),
    )(x, gslab, fslab, wslab)
    return out[:, :num_graphs, :e]


def _reference_matched(x_b, gslab_b, fslab_b, wslab, n, f, e, gpad):
    """Plain-JAX reference applying the exact bf16-in / f32-acc casts of the kernel."""
    a_fold = gslab_b[0:n, :]
    pools = gslab_b[n:n + 2 * gpad, :]
    b_fold = fslab_b[0:n, 0:e]
    b1 = fslab_b[n:n + 1, 0:e]
    b2 = fslab_b[n + 1:n + 2, :]
    w_fold = wslab[0:f, 0:e]
    w1a = wslab[e:2 * e, 0:e]
    w1b = wslab[2 * e:3 * e, 0:e]
    w2 = wslab[3 * e:4 * e, :]

    xb = x_b.astype(jnp.bfloat16)
    hw = jnp.dot(xb, w_fold, preferred_element_type=jnp.float32)
    h = (jnp.dot(a_fold, hw.astype(jnp.bfloat16),
                 preferred_element_type=jnp.float32) + b_fold).astype(jnp.bfloat16)
    pooled = jnp.dot(pools, h, preferred_element_type=jnp.float32)
    add_p = pooled[0:gpad].astype(jnp.bfloat16)
    mean_p = pooled[gpad:].astype(jnp.bfloat16)
    z = jnp.maximum(jnp.dot(add_p, w1a, preferred_element_type=jnp.float32)
                    + jnp.dot(mean_p, w1b, preferred_element_type=jnp.float32) + b1,
                    0.0)
    return jnp.dot(z.astype(jnp.bfloat16), w2,
                   preferred_element_type=jnp.float32) + b2


def _reference_f32(x_b, edge_index, batch_index, params, *, num_convs, num_graphs,
                   embedding_size):
    """Full-f32 semantic reference (matches the PyTorch forward)."""
    n_nodes, n_feat = x_b.shape
    e = embedding_size
    h = jnp.pad(x_b, ((0, 0), (0, e - n_feat))).astype(jnp.float32)
    src, dst = edge_index[0], edge_index[1]
    adj = jnp.zeros((n_nodes, n_nodes), jnp.float32).at[dst, src].add(1.0)
    adj = adj + jnp.eye(n_nodes, dtype=jnp.float32)
    deg = jnp.sum(adj, axis=1)
    dinv = jax.lax.rsqrt(jnp.maximum(deg, 1.0))
    a_hat = dinv[:, None] * adj * dinv[None, :]
    for _ in range(num_convs):
        h = a_hat @ (h @ params['w_gcn'].T) + params['b_gcn']
    onehot = (batch_index[None, :] == jnp.arange(num_graphs)[:, None]
              ).astype(jnp.float32)
    add_p = onehot @ h
    mean_p = (onehot / jnp.sum(onehot, axis=1, keepdims=True)) @ h
    pooled = jnp.concatenate([add_p, mean_p], axis=1)
    z = jnp.maximum(pooled @ params['w1'].T + params['b1'], 0.0)
    return z @ params['w2'].T + params['b2']


if __name__ == "__main__":
    # --- configuration ---
    NUM_NODE_FEATURES = 4
    EMBEDDING_SIZE = 32
    NUM_CONVS = 2
    NUM_LINEAR = 2          # post_mp: Linear(2E,E)+ReLU+Dropout(0), then Linear(E,E)
    AGGR_STEPS = 0          # skip Set2Set branch
    N_NODES = 16
    NUM_GRAPHS = 2          # graphs per graph-batch
    NUM_BATCHES = 4         # independent graph-batches per pallas_call (grid axis)
    GPAD = 8                # graphs rounded up to 8 sublanes for unmasked stores

    key = jax.random.PRNGKey(0)
    k_x, k_wg, k_bg, k_w1, k_b1, k_w2, k_b2 = jax.random.split(key, 7)

    # Node features [B, N, F], float32 (raw; pad/cast folded into kernel).
    x = jax.random.normal(k_x, (NUM_BATCHES, N_NODES, NUM_NODE_FEATURES),
                          dtype=jnp.float32)

    # Two ring graphs of 8 nodes each, edges in both directions (symmetric).
    def ring_edges(offset, n):
        s = jnp.arange(n) + offset
        d = (jnp.arange(n) + 1) % n + offset
        return jnp.stack([jnp.concatenate([s, d]), jnp.concatenate([d, s])])

    edge_index = jnp.concatenate(
        [ring_edges(0, 8), ring_edges(8, 8)], axis=1).astype(jnp.int32)
    batch_index = jnp.concatenate(
        [jnp.zeros(8, jnp.int32), jnp.ones(8, jnp.int32)])

    E = EMBEDDING_SIZE
    params = {
        'w_gcn': 0.1 * jax.random.normal(k_wg, (E, E), dtype=jnp.float32),
        'b_gcn': 0.1 * jax.random.normal(k_bg, (E,), dtype=jnp.float32),
        'w1':    0.1 * jax.random.normal(k_w1, (E, 2 * E), dtype=jnp.float32),
        'b1':    0.1 * jax.random.normal(k_b1, (E,), dtype=jnp.float32),
        'w2':    0.1 * jax.random.normal(k_w2, (E, E), dtype=jnp.float32),
        'b2':    0.1 * jax.random.normal(k_b2, (E,), dtype=jnp.float32),
    }

    # One-time (per graph batch / per model) operator folding + packing.
    a_hat, add_pool, mean_pool = build_graph_operators(
        edge_index, batch_index, N_NODES, NUM_GRAPHS, GPAD)
    gslab1, fslab1, wslab = pack_operands(a_hat, add_pool, mean_pool, params,
                                          NUM_CONVS)
    # Same topology for every graph-batch in this demo; per-batch slabs in general.
    gslab = jnp.tile(gslab1[None], (NUM_BATCHES, 1, 1))
    fslab = jnp.tile(fslab1[None], (NUM_BATCHES, 1, 1))
    gslab, fslab, wslab = jax.block_until_ready((gslab, fslab, wslab))

    out = gcn_forward(x, gslab, fslab, wslab, num_graphs=NUM_GRAPHS)
    out = jax.block_until_ready(out)
    assert out.shape == (NUM_BATCHES, NUM_GRAPHS, E)

    for b in range(NUM_BATCHES):
        # 1) Exact-arithmetic check vs a reference with the kernel's bf16/f32 casts.
        ref_m = _reference_matched(x[b], gslab1, fslab1, wslab,
                                   N_NODES, NUM_NODE_FEATURES, E, GPAD)
        assert jnp.allclose(out[b], ref_m[:NUM_GRAPHS, :E], atol=2e-3, rtol=2e-3)

        # 2) Semantic check vs the full-f32 PyTorch-equivalent forward; tolerance
        #    covers bf16 MXU rounding + the conv-fold reassociation.
        ref_f = _reference_f32(x[b], edge_index, batch_index, params,
                               num_convs=NUM_CONVS, num_graphs=NUM_GRAPHS,
                               embedding_size=E)
        assert jnp.allclose(out[b], ref_f, atol=3e-2, rtol=3e-2)

    print("KERNEL_OK")
</pallas_src>

<mosaic_0001>
module attributes {stable_mosaic.version = 11 : i64} {
  func.func @_gcn_kernel(%arg0: i32, %arg1: memref<1x16x4xf32, #tpu.memory_space<vmem>>, %arg2: memref<1x32x16xbf16, #tpu.memory_space<vmem>>, %arg3: memref<1x18x128xf32, #tpu.memory_space<vmem>>, %arg4: memref<128x128xbf16, #tpu.memory_space<vmem>>, %arg5: memref<1x8x128xf32, #tpu.memory_space<vmem>>) attributes {dimension_semantics = [#tpu.dimension_semantics<parallel>], iteration_bounds = array<i64: 4>, scalar_prefetch = 0 : i64, scratch_operands = 0 : i64, tpu.core_type = #tpu.core_type<tc>, window_params = [{transform_indices = @transform_0, window_bounds = array<i64: 1, 16, 4>}, {transform_indices = @transform_1, window_bounds = array<i64: 1, 32, 16>}, {transform_indices = @transform_2, window_bounds = array<i64: 1, 18, 128>}, {pipeline_mode = #tpu.pipeline_mode<synchronous>, transform_indices = @transform_3, window_bounds = array<i64: 128, 128>}, {transform_indices = @transform_4, window_bounds = array<i64: 1, 8, 128>}]} {
    %c0 = arith.constant 0 : index
    %c0_0 = arith.constant 0 : index
    %c0_1 = arith.constant 0 : index
    %0 = vector.load %arg2[%c0, %c0_0, %c0_1] : memref<1x32x16xbf16, #tpu.memory_space<vmem>>, vector<1x16x16xbf16>
    %1 = vector.shape_cast %0 : vector<1x16x16xbf16> to vector<16x16xbf16>
    %c0_2 = arith.constant 0 : index
    %c16 = arith.constant 16 : index
    %c0_3 = arith.constant 0 : index
    %2 = vector.load %arg2[%c0_2, %c16, %c0_3] : memref<1x32x16xbf16, #tpu.memory_space<vmem>>, vector<1x16x16xbf16>
    %3 = vector.shape_cast %2 : vector<1x16x16xbf16> to vector<16x16xbf16>
    %c0_4 = arith.constant 0 : index
    %c0_5 = arith.constant 0 : index
    %c0_6 = arith.constant 0 : index
    %4 = vector.load %arg3[%c0_4, %c0_5, %c0_6] : memref<1x18x128xf32, #tpu.memory_space<vmem>>, vector<1x16x32xf32>
    %5 = vector.shape_cast %4 : vector<1x16x32xf32> to vector<16x32xf32>
    %c0_7 = arith.constant 0 : index
    %c16_8 = arith.constant 16 : index
    %c0_9 = arith.constant 0 : index
    %6 = vector.load %arg3[%c0_7, %c16_8, %c0_9] : memref<1x18x128xf32, #tpu.memory_space<vmem>>, vector<1x1x32xf32>
    %7 = vector.shape_cast %6 : vector<1x1x32xf32> to vector<1x32xf32>
    %c0_10 = arith.constant 0 : index
    %c17 = arith.constant 17 : index
    %c0_11 = arith.constant 0 : index
    %8 = vector.load %arg3[%c0_10, %c17, %c0_11] : memref<1x18x128xf32, #tpu.memory_space<vmem>>, vector<1x1x128xf32>
    %9 = vector.shape_cast %8 : vector<1x1x128xf32> to vector<1x128xf32>
    %c0_12 = arith.constant 0 : index
    %c0_13 = arith.constant 0 : index
    %10 = vector.load %arg4[%c0_12, %c0_13] : memref<128x128xbf16, #tpu.memory_space<vmem>>, vector<4x32xbf16>
    %c32 = arith.constant 32 : index
    %c0_14 = arith.constant 0 : index
    %11 = vector.load %arg4[%c32, %c0_14] : memref<128x128xbf16, #tpu.memory_space<vmem>>, vector<32x32xbf16>
    %c64 = arith.constant 64 : index
    %c0_15 = arith.constant 0 : index
    %12 = vector.load %arg4[%c64, %c0_15] : memref<128x128xbf16, #tpu.memory_space<vmem>>, vector<32x32xbf16>
    %c96 = arith.constant 96 : index
    %c0_16 = arith.constant 0 : index
    %13 = vector.load %arg4[%c96, %c0_16] : memref<128x128xbf16, #tpu.memory_space<vmem>>, vector<32x128xbf16>
    %c0_17 = arith.constant 0 : index
    %c0_18 = arith.constant 0 : index
    %c0_19 = arith.constant 0 : index
    %14 = vector.load %arg1[%c0_17, %c0_18, %c0_19] : memref<1x16x4xf32, #tpu.memory_space<vmem>>, vector<1x16x4xf32>
    %15 = vector.shape_cast %14 : vector<1x16x4xf32> to vector<16x4xf32>
    %16 = arith.truncf %15 : vector<16x4xf32> to vector<16x4xbf16>
    %cst = arith.constant dense<0.000000e+00> : vector<16x32xf32>
    %17 = tpu.matmul %16, %10, %cst {dimension_numbers = #tpu.dot_dimension_numbers<[1], [0], [0], [1], [0, 0, 1, 1], [], []>} : vector<16x4xbf16>, vector<4x32xbf16>, vector<16x32xf32> -> vector<16x32xf32>
    %18 = arith.truncf %17 : vector<16x32xf32> to vector<16x32xbf16>
    %cst_20 = arith.constant dense<0.000000e+00> : vector<16x32xf32>
    %19 = tpu.matmul %1, %18, %cst_20 {dimension_numbers = #tpu.dot_dimension_numbers<[1], [0], [0], [1], [0, 0, 1, 1], [], []>} : vector<16x16xbf16>, vector<16x32xbf16>, vector<16x32xf32> -> vector<16x32xf32>
    %20 = arith.addf %19, %5 : vector<16x32xf32>
    %21 = arith.truncf %20 : vector<16x32xf32> to vector<16x32xbf16>
    %cst_21 = arith.constant dense<0.000000e+00> : vector<16x32xf32>
    %22 = tpu.matmul %3, %21, %cst_21 {dimension_numbers = #tpu.dot_dimension_numbers<[1], [0], [0], [1], [0, 0, 1, 1], [], []>} : vector<16x16xbf16>, vector<16x32xbf16>, vector<16x32xf32> -> vector<16x32xf32>
    %23 = vector.extract_strided_slice %22 {offsets = [0, 0], sizes = [8, 32], strides = [1, 1]} : vector<16x32xf32> to vector<8x32xf32>
    %24 = arith.truncf %23 : vector<8x32xf32> to vector<8x32xbf16>
    %25 = vector.extract_strided_slice %22 {offsets = [8, 0], sizes = [8, 32], strides = [1, 1]} : vector<16x32xf32> to vector<8x32xf32>
    %26 = arith.truncf %25 : vector<8x32xf32> to vector<8x32xbf16>
    %cst_22 = arith.constant dense<0.000000e+00> : vector<8x32xf32>
    %27 = tpu.matmul %24, %11, %cst_22 {dimension_numbers = #tpu.dot_dimension_numbers<[1], [0], [0], [1], [0, 0, 1, 1], [], []>} : vector<8x32xbf16>, vector<32x32xbf16>, vector<8x32xf32> -> vector<8x32xf32>
    %cst_23 = arith.constant dense<0.000000e+00> : vector<8x32xf32>
    %28 = tpu.matmul %26, %12, %cst_23 {dimension_numbers = #tpu.dot_dimension_numbers<[1], [0], [0], [1], [0, 0, 1, 1], [], []>} : vector<8x32xbf16>, vector<32x32xbf16>, vector<8x32xf32> -> vector<8x32xf32>
    %29 = arith.addf %27, %28 : vector<8x32xf32>
    %30 = vector.broadcast %7 : vector<1x32xf32> to vector<8x32xf32>
    %31 = arith.addf %29, %30 : vector<8x32xf32>
    %cst_24 = arith.constant 0.000000e+00 : f32
    %32 = vector.broadcast %cst_24 : f32 to vector<8x32xf32>
    %33 = arith.maximumf %31, %32 : vector<8x32xf32>
    %34 = arith.truncf %33 : vector<8x32xf32> to vector<8x32xbf16>
    %cst_25 = arith.constant dense<0.000000e+00> : vector<8x128xf32>
    %35 = tpu.matmul %34, %13, %cst_25 {dimension_numbers = #tpu.dot_dimension_numbers<[1], [0], [0], [1], [0, 0, 1, 1], [], []>} : vector<8x32xbf16>, vector<32x128xbf16>, vector<8x128xf32> -> vector<8x128xf32>
    %36 = vector.broadcast %9 : vector<1x128xf32> to vector<8x128xf32>
    %37 = arith.addf %35, %36 : vector<8x128xf32>
    %c0_26 = arith.constant 0 : index
    %c0_27 = arith.constant 0 : index
    %c0_28 = arith.constant 0 : index
    %38 = vector.load %arg5[%c0_26, %c0_27, %c0_28] : memref<1x8x128xf32, #tpu.memory_space<vmem>>, vector<1x8x128xf32>
    %39 = vector.shape_cast %38 : vector<1x8x128xf32> to vector<8x128xf32>
    %40 = vector.shape_cast %37 : vector<8x128xf32> to vector<1x8x128xf32>
    tpu.vector_store %arg5[%c0_26, %c0_27, %c0_28], %40 {strides = array<i32>} : memref<1x8x128xf32, #tpu.memory_space<vmem>>, vector<1x8x128xf32>,
    return
  }
  func.func @transform_0(%arg0: i32) -> (i32, i32, i32) {
    %c0_i32 = arith.constant 0 : i32
    %c0_i32_0 = arith.constant 0 : i32
    %c0_i32_1 = arith.constant 0 : i32
    return %arg0, %c0_i32, %c0_i32_0 : i32, i32, i32
  }
  func.func @transform_1(%arg0: i32) -> (i32, i32, i32) {
    %c0_i32 = arith.constant 0 : i32
    %c0_i32_0 = arith.constant 0 : i32
    %c0_i32_1 = arith.constant 0 : i32
    return %arg0, %c0_i32, %c0_i32_0 : i32, i32, i32
  }
  func.func @transform_2(%arg0: i32) -> (i32, i32, i32) {
    %c0_i32 = arith.constant 0 : i32
    %c0_i32_0 = arith.constant 0 : i32
    %c0_i32_1 = arith.constant 0 : i32
    return %arg0, %c0_i32, %c0_i32_0 : i32, i32, i32
  }
  func.func @transform_3(%arg0: i32) -> (i32, i32) {
    %c0_i32 = arith.constant 0 : i32
    %c0_i32_0 = arith.constant 0 : i32
    %c0_i32_1 = arith.constant 0 : i32
    return %c0_i32, %c0_i32_0 : i32, i32
  }
  func.func @transform_4(%arg0: i32) -> (i32, i32, i32) {
    %c0_i32 = arith.constant 0 : i32
    %c0_i32_0 = arith.constant 0 : i32
    %c0_i32_1 = arith.constant 0 : i32
    return %arg0, %c0_i32, %c0_i32_0 : i32, i32, i32
  }
}

</mosaic_0001>

<llo_original>
// kernel: gcn_forward.1
$region0: #{gcn_forward.1}
  #allocation0 [shape = 'u32[]', space=smem, size = 0x4, offset = 0x4, fixed_abs, tag = 'smem constant byte address 0x4 - core index']
  #allocation1 [shape = 'u32[144,128]{1,0:T(1,128)}', space=vmem, size = 0x12000, scoped, tag = 'internal scratch']
  %s0 = inlined_call_operand.vmem [shape: f32[4,16,4], index: 0, kind: input, shape index: {}]
  %s1 = inlined_call_operand.vmem [shape: bf16[4,32,16], index: 1, kind: input, shape index: {}]
  %s2 = inlined_call_operand.vmem [shape: f32[4,18,128], index: 2, kind: input, shape index: {}]
  %s3 = inlined_call_operand.vmem [shape: bf16[128,128], index: 3, kind: input, shape index: {}]
  %s4 = inlined_call_operand.vmem [shape: f32[4,8,128], index: 4, kind: output, shape index: {}]
  %s5 = sld [smem:[#allocation0]]
  $region49: #{gcn_forward.1} parent=0
    _
  %s7 = ssub.s32 1, %s5
  %s8 = scalar_select 0, %s7, %s5
  loop: start=0, step=1, limit=6
  $region2: #{gcn_forward.1} parent=0 // loop_pre_header
    _
  $region3: #{gcn_forward.1} parent=0 // loop_header
    %s10 = sphi 0, %s14
    %p11 = scmp.ge.s32.totalorder %s10, 6
    %s20 = sphi 0, %s22
    %s23 = sphi 0, %s20
    %s24 = sphi 0, %s23
    %s40 = sphi 0, %s24
    %s46 = sphi 0, %s48
    %s49 = sphi 0, %s46
    %s50 = sphi 0, %s49
    %s66 = sphi 0, %s50
    %s72 = sphi 0, %s74
    %s75 = sphi 0, %s72
    %s76 = sphi 0, %s75
    %s92 = sphi 0, %s76
    %s96 = sphi 0, %s96
    %s98 = sphi 0, %s96
    %s99 = sphi 0, %s98
    %s113 = sphi 0, %s99
    %s119 = sphi 0, %s121
    %s122 = sphi 0, %s119
    %s123 = sphi 0, %s122
    %s139 = sphi 0, %s123
  $region4: #{gcn_forward.1} parent=0 // loop_header_branch
    %13 = sbr.rel (%p11) target = $region8
  $region5: #{gcn_forward.1} parent=0 // loop_body
    %s15 = ssub.s32 %s10, 1
    %s16 = ssub.s32 %s10, 2
    %s17 = sadd.s32 %s10, 1
    %s18 = ssub.s32 %s10, %s17
    %p19 = scmp.eq.s32.totalorder %s18, 0
    %s21 = sadd.s32 %s20, 1
    %s22 = scalar_select %p19, %s20, %s21
    %p25 = pneg %p19
    %p26 = scmp.eq.s32.totalorder %s10, 3
    %p27 = por %p25, %p26
    %p28 = scmp.ne.s32.totalorder %s20, %s23
    %p29 = scmp.eq.s32.totalorder %s10, 0
    %p30 = por %p28, %p29
    %p31 = scmp.ne.s32.totalorder %s20, %s23
    %p32 = scmp.eq.s32.totalorder %s15, 3
    %p33 = por %p31, %p32
    %p34 = scmp.ne.s32.totalorder %s23, %s24
    %p35 = scmp.eq.s32.totalorder %s15, 0
    %p36 = por %p34, %p35
    %p37 = scmp.ne.s32.totalorder %s23, %s24
    %p38 = scmp.eq.s32.totalorder %s16, 3
    %p39 = por %p37, %p38
    %p41 = scmp.ne.s32.totalorder %s24, %s40
    %p42 = scmp.eq.s32.totalorder %s16, 0
    %p43 = por %p41, %p42
    %s44 = ssub.s32 %s10, %s17
    %p45 = scmp.eq.s32.totalorder %s44, 0
    %s47 = sadd.s32 %s46, 1
    %s48 = scalar_select %p45, %s46, %s47
    %p51 = pneg %p45
    %p52 = scmp.eq.s32.totalorder %s10, 3
    %p53 = por %p51, %p52
    %p54 = scmp.ne.s32.totalorder %s46, %s49
    %p55 = scmp.eq.s32.totalorder %s10, 0
    %p56 = por %p54, %p55
    %p57 = scmp.ne.s32.totalorder %s46, %s49
    %p58 = scmp.eq.s32.totalorder %s15, 3
    %p59 = por %p57, %p58
    %p60 = scmp.ne.s32.totalorder %s49, %s50
    %p61 = scmp.eq.s32.totalorder %s15, 0
    %p62 = por %p60, %p61
    %p63 = scmp.ne.s32.totalorder %s49, %s50
    %p64 = scmp.eq.s32.totalorder %s16, 3
    %p65 = por %p63, %p64
    %p67 = scmp.ne.s32.totalorder %s50, %s66
    %p68 = scmp.eq.s32.totalorder %s16, 0
    %p69 = por %p67, %p68
    %s70 = ssub.s32 %s10, %s17
    %p71 = scmp.eq.s32.totalorder %s70, 0
    %s73 = sadd.s32 %s72, 1
    %s74 = scalar_select %p71, %s72, %s73
    %p77 = pneg %p71
    %p78 = scmp.eq.s32.totalorder %s10, 3
    %p79 = por %p77, %p78
    %p80 = scmp.ne.s32.totalorder %s72, %s75
    %p81 = scmp.eq.s32.totalorder %s10, 0
    %p82 = por %p80, %p81
    %p83 = scmp.ne.s32.totalorder %s72, %s75
    %p84 = scmp.eq.s32.totalorder %s15, 3
    %p85 = por %p83, %p84
    %p86 = scmp.ne.s32.totalorder %s75, %s76
    %p87 = scmp.eq.s32.totalorder %s15, 0
    %p88 = por %p86, %p87
    %p89 = scmp.ne.s32.totalorder %s75, %s76
    %p90 = scmp.eq.s32.totalorder %s16, 3
    %p91 = por %p89, %p90
    %p93 = scmp.ne.s32.totalorder %s76, %s92
    %p94 = scmp.eq.s32.totalorder %s16, 0
    %p95 = por %p93, %p94
    %s97 = sadd.s32 %s96, 1
    %p100 = scmp.eq.s32.totalorder %s10, 3
    %p101 = scmp.ne.s32.totalorder %s96, %s98
    %p102 = scmp.eq.s32.totalorder %s10, 0
    %p103 = por %p101, %p102
    %p104 = scmp.ne.s32.totalorder %s96, %s98
    %p105 = scmp.eq.s32.totalorder %s15, 3
    %p106 = por %p104, %p105
    %p107 = scmp.ne.s32.totalorder %s98, %s99
    %p108 = scmp.eq.s32.totalorder %s15, 0
    %p109 = por %p107, %p108
    %p110 = scmp.ne.s32.totalorder %s98, %s99
    %p111 = scmp.eq.s32.totalorder %s16, 3
    %p112 = por %p110, %p111
    %p114 = scmp.ne.s32.totalorder %s99, %s113
    %p115 = scmp.eq.s32.totalorder %s16, 0
    %p116 = por %p114, %p115
    %s117 = ssub.s32 %s10, %s17
    %p118 = scmp.eq.s32.totalorder %s117, 0
    %s120 = sadd.s32 %s119, 1
    %s121 = scalar_select %p118, %s119, %s120
    %p124 = pneg %p118
    %p125 = scmp.eq.s32.totalorder %s10, 3
    %p126 = por %p124, %p125
    %p127 = scmp.ne.s32.totalorder %s119, %s122
    %p128 = scmp.eq.s32.totalorder %s10, 0
    %p129 = por %p127, %p128
    %p130 = scmp.ne.s32.totalorder %s119, %s122
    %p131 = scmp.eq.s32.totalorder %s15, 3
    %p132 = por %p130, %p131
    %p133 = scmp.ne.s32.totalorder %s122, %s123
    %p134 = scmp.eq.s32.totalorder %s15, 0
    %p135 = por %p133, %p134
    %p136 = scmp.ne.s32.totalorder %s122, %s123
    %p137 = scmp.eq.s32.totalorder %s16, 3
    %p138 = por %p136, %p137
    %p140 = scmp.ne.s32.totalorder %s123, %s139
    %p141 = scmp.eq.s32.totalorder %s16, 0
    %p142 = por %p140, %p141
    %p143 = scmp.le.s32.totalorder 1, %s10
    %p144 = scmp.lt.s32.totalorder %s10, 5
    %p145 = pnand %p143, %p144
    %p146 = pneg %p145
    // Predicated region
    $region9: #{gcn_forward.1} parent=5 // pred_check
      _
    $region10: #{gcn_forward.1} parent=5 // pred_check_branch
      %148 = sbr.rel (%p145) target = $region12
    $region11: #{gcn_forward.1} parent=5 // pred_region
      %s149 = ssub.s32 %s10, 1
      // Predicated region
      $region13: #{gcn_forward.1} parent=11 // pred_check
        %p150 = pneg %p109
      $region14: #{gcn_forward.1} parent=11 // pred_check_branch
        %152 = sbr.rel (%p150) target = $region16
      $region15: #{gcn_forward.1} parent=11 // pred_region
        _
      $region16: #{gcn_forward.1} parent=11 // pred_fallthru
        _
    $region12: #{gcn_forward.1} parent=5 // pred_fallthru
      _
    %p153 = scmp.lt.s32.totalorder %s10, 4
    // Predicated region
    $region17: #{gcn_forward.1} parent=5 // pred_check
      %p154 = pneg %p153
    $region18: #{gcn_forward.1} parent=5 // pred_check_branch
      %156 = sbr.rel (%p154) target = $region20
    $region19: #{gcn_forward.1} parent=5 // pred_region
      // Predicated region
      $region21: #{gcn_forward.1} parent=19 // pred_check
        %p157 = pneg %p30
      $region22: #{gcn_forward.1} parent=19 // pred_check_branch
        %159 = sbr.rel (%p157) target = $region24
      $region23: #{gcn_forward.1} parent=19 // pred_region
        %p160 = scmp.lt.s32.totalorder %s10, 3
        %s161 = scalar_select %p160, %s10, 3
        %s162 = smul.addr %s161, 2
        %s163 = smul.addr %s162, 8
        %s164 = scalar_lea.vmem %s0, %s163
      $region24: #{gcn_forward.1} parent=19 // pred_fallthru
        _
      // Predicated region
      $region25: #{gcn_forward.1} parent=19 // pred_check
        %p165 = pneg %p56
      $region26: #{gcn_forward.1} parent=19 // pred_check_branch
        %167 = sbr.rel (%p165) target = $region28
      $region27: #{gcn_forward.1} parent=19 // pred_region
        %p168 = scmp.lt.s32.totalorder %s10, 3
        %s169 = scalar_select %p168, %s10, 3
        %s170 = smul.addr %s169, 4
        %s171 = smul.addr %s170, 4
        %s172 = scalar_lea.vmem %s1, %s171
      $region28: #{gcn_forward.1} parent=19 // pred_fallthru
        _
      // Predicated region
      $region29: #{gcn_forward.1} parent=19 // pred_check
        %p173 = pneg %p82
      $region30: #{gcn_forward.1} parent=19 // pred_check_branch
        %175 = sbr.rel (%p173) target = $region32
      $region31: #{gcn_forward.1} parent=19 // pred_region
        %p176 = scmp.lt.s32.totalorder %s10, 3
        %s177 = scalar_select %p176, %s10, 3
        %s178 = smul.addr %s177, 3
        %s179 = smul.addr %s178, 8
        %s180 = scalar_lea.vmem %s2, %s179
      $region32: #{gcn_forward.1} parent=19 // pred_fallthru
        _
    $region20: #{gcn_forward.1} parent=5 // pred_fallthru
      _
    %p181 = scmp.le.s32.totalorder 1, %s10
    %p182 = scmp.lt.s32.totalorder %s10, 5
    %p183 = pnand %p181, %p182
    %p184 = pneg %p183
    // Predicated region
    $region33: #{gcn_forward.1} parent=5 // pred_check
      _
    $region34: #{gcn_forward.1} parent=5 // pred_check_branch
      %186 = sbr.rel (%p183) target = $region36
    $region35: #{gcn_forward.1} parent=5 // pred_region
      %s187 = ssub.s32 %s10, 1
      %p188 = scmp.lt.s32.totalorder %s15, 3
      %s189 = scalar_select %p188, %s15, 3
      %s190 = smul.addr %s189, 2
      %s191 = smul.addr %s190, 8
      %s192 = scalar_lea.vmem %s0, %s191
      %p193 = pneg %p36
      %p194 = pneg %p33
      %p195 = scmp.lt.s32.totalorder %s15, 3
      %s196 = scalar_select %p195, %s15, 3
      %s197 = smul.addr %s196, 4
      %s198 = smul.addr %s197, 4
      %s199 = scalar_lea.vmem %s1, %s198
      %p200 = pneg %p62
      %p201 = pneg %p59
      %p202 = scmp.lt.s32.totalorder %s15, 3
      %s203 = scalar_select %p202, %s15, 3
      %s204 = smul.addr %s203, 3
      %s205 = smul.addr %s204, 8
      %s206 = scalar_lea.vmem %s2, %s205
      %p207 = pneg %p88
      %p208 = pneg %p85
      %p209 = pneg %p109
      %p210 = pneg %p106
      %p211 = pneg %p135
      %p212 = pneg %p132
      %p213 = scmp.lt.s32.totalorder %s15, 3
      %s214 = scalar_select %p213, %s15, 3
      %s215 = smul.addr %s214, 8
      %s216 = scalar_lea.vmem %s4, %s215
      %p217 = scmp.lt.s32.totalorder %s15, 3
      %s218 = scalar_select %p217, %s15, 3
      %s219 = smul.addr %s218, 2
      %s220 = smul.addr %s219, 8
      %s221 = scalar_lea.vmem %s0, %s220
      %p222 = scmp.lt.s32.totalorder %s15, 3
      %s223 = scalar_select %p222, %s15, 3
      %s224 = smul.addr %s223, 4
      %s225 = smul.addr %s224, 4
      %s226 = scalar_lea.vmem %s1, %s225
      %p227 = scmp.lt.s32.totalorder %s15, 3
      %s228 = scalar_select %p227, %s15, 3
      %s229 = smul.addr %s228, 3
      %s230 = smul.addr %s229, 8
      %s231 = scalar_lea.vmem %s2, %s230
      %p232 = scmp.lt.s32.totalorder %s15, 3
      %s233 = scalar_select %p232, %s15, 3
      %s234 = smul.addr %s233, 8
      %s235 = scalar_lea.vmem %s4, %s234
      %v237 = vld [vmem:[%s226] sm:$0xf]
      %v238 = vld [vmem:[%s226 + $0x4] sm:$0xf]
      %v239 = vld [vmem:[%s226 + $0x8] sm:$0xf]
      %v240 = vld [vmem:[%s226 + $0xc] sm:$0xf]
      %v241 = vld [vmem:[%s231] sm:$0xff]
      %v242 = vld [vmem:[%s231 + $0x8] sm:$0xff]
      %v243 = vld [vmem:[%s231 + $0x10] sm:$0x1]
      %v244 = vld [vmem:[%s231 + $0x11] sm:$0x1]
      %v245 = vld [vmem:[%s3] sm:$0x3]
      %v246 = vld [vmem:[%s3 + $0x10] sm:$0xf]
      %v247 = vld [vmem:[%s3 + $0x14] sm:$0xf]
      %v248 = vld [vmem:[%s3 + $0x18] sm:$0xf]
      %v249 = vld [vmem:[%s3 + $0x1c] sm:$0xf]
      %v250 = vld [vmem:[%s3 + $0x20] sm:$0xf]
      %v251 = vld [vmem:[%s3 + $0x24] sm:$0xf]
      %v252 = vld [vmem:[%s3 + $0x28] sm:$0xf]
      %v253 = vld [vmem:[%s3 + $0x2c] sm:$0xf]
      %v254 = vld [vmem:[%s3 + $0x30] sm:$0xf]
      %v255 = vld [vmem:[%s3 + $0x34] sm:$0xf]
      %v256 = vld [vmem:[%s3 + $0x38] sm:$0xf]
      %v257 = vld [vmem:[%s3 + $0x3c] sm:$0xf]
      %v258 = vld [vmem:[%s221] sm:$0xff]
      %v259 = vld [vmem:[%s221 + $0x8] sm:$0xff]
      %v260 = vpack.c.bf16 %v259, %v258
      %vm261 = vcmask 31744
      %v263 = vsel %vm261, %v260, 0
      %vm265 = vcmask 1041408
      %v267 = vsel %vm265, %v245, 0
      %269 = vmatprep.subr.bf16.mxu0 0
      %270 = vmatpush1.bf16.msra.mxu0 %v267
      %271 = vmatprep.subr.bf16.mxu0 0
      %272 = vmatpush1.bf16.msra.mxu0 0
      %273 = vmatprep.subr.bf16.mxu0 0
      %274 = vmatpush1.bf16.msra.mxu0 0
      %275 = vmatprep.subr.bf16.mxu0 0
      %276 = vmatpush1.bf16.msra.mxu0 0
      %277 = vmatprep.subr.bf16.mxu0 0
      %278 = vmatpush1.bf16.msra.mxu0 0
      %279 = vmatprep.subr.bf16.mxu0 0
      %280 = vmatpush1.bf16.msra.mxu0 0
      %281 = vmatprep.subr.bf16.mxu0 0
      %282 = vmatpush1.bf16.msra.mxu0 0
      %283 = vmatprep.subr.bf16.mxu0 0
      %284 = vmatpush1.bf16.msra.mxu0 0
      %285 = vmatprep.subr.bf16.mxu0 0
      %286 = vmatpush1.bf16.msra.mxu0 0
      %287 = vmatprep.subr.bf16.mxu0 0
      %288 = vmatpush1.bf16.msra.mxu0 0
      %289 = vmatprep.subr.bf16.mxu0 0
      %290 = vmatpush1.bf16.msra.mxu0 0
      %291 = vmatprep.subr.bf16.mxu0 0
      %292 = vmatpush1.bf16.msra.mxu0 0
      %293 = vmatprep.subr.bf16.mxu0 0
      %294 = vmatpush1.bf16.msra.mxu0 0
      %295 = vmatprep.subr.bf16.mxu0 0
      %296 = vmatpush1.bf16.msra.mxu0 0
      %297 = vmatprep.subr.bf16.mxu0 0
      %298 = vmatpush1.bf16.msra.mxu0 0
      %299 = vmatprep.subr.bf16.mxu0 0
      %300 = vmatpush1.bf16.msra.mxu0 0
      %301 = vmatprep.mubr.bf16.mxu0 0
      %302 = vmatmul.mubr.bf16.gmra.mrb[0].mxu0 %v263
      %v303 = vpop.f32.mrb[0].mxu0
      %v304 = vadd.f32 0.0, %v303
      %v305 = vpop.f32.mrb[0].mxu0
      %v306 = vpop.f32.mrb[0].mxu0
      %v307 = vadd.f32 0.0, %v306
      %v308 = vpop.f32.mrb[0].mxu0
      %309 = vdwg.mxu0
      %v310 = vpack.c.bf16 %v307, %v304
      %v313 = vunpack.c.l.b16 %v237
      %v314 = vunpack.c.l.b16 %v238
      %v315 = vpack.c.b16 %v314, %v313
      %vm316 = vcmask 130048
      %v318 = vsel %vm316, %v315, 0
      %320 = vmatprep.subr.bf16.mxu0 0
      %321 = vmatpush1.bf16.msra.mxu0 %v310
      %322 = vmatprep.subr.bf16.mxu0 0
      %323 = vmatpush1.bf16.msra.mxu0 0
      %324 = vmatprep.subr.bf16.mxu0 0
      %325 = vmatpush1.bf16.msra.mxu0 0
      %326 = vmatprep.subr.bf16.mxu0 0
      %327 = vmatpush1.bf16.msra.mxu0 0
      %328 = vmatprep.subr.bf16.mxu0 0
      %329 = vmatpush1.bf16.msra.mxu0 0
      %330 = vmatprep.subr.bf16.mxu0 0
      %331 = vmatpush1.bf16.msra.mxu0 0
      %332 = vmatprep.subr.bf16.mxu0 0
      %333 = vmatpush1.bf16.msra.mxu0 0
      %334 = vmatprep.subr.bf16.mxu0 0
      %335 = vmatpush1.bf16.msra.mxu0 0
      %336 = vmatprep.subr.bf16.mxu0 0
      %337 = vmatpush1.bf16.msra.mxu0 0
      %338 = vmatprep.subr.bf16.mxu0 0
      %339 = vmatpush1.bf16.msra.mxu0 0
      %340 = vmatprep.subr.bf16.mxu0 0
      %341 = vmatpush1.bf16.msra.mxu0 0
      %342 = vmatprep.subr.bf16.mxu0 0
      %343 = vmatpush1.bf16.msra.mxu0 0
      %344 = vmatprep.subr.bf16.mxu0 0
      %345 = vmatpush1.bf16.msra.mxu0 0
      %346 = vmatprep.subr.bf16.mxu0 0
      %347 = vmatpush1.bf16.msra.mxu0 0
      %348 = vmatprep.subr.bf16.mxu0 0
      %349 = vmatpush1.bf16.msra.mxu0 0
      %350 = vmatprep.subr.bf16.mxu0 0
      %351 = vmatpush1.bf16.msra.mxu0 0
      %352 = vmatprep.mubr.bf16.mxu0 0
      %353 = vmatmul.mubr.bf16.gmra.mrb[0].mxu0 %v318
      %v354 = vpop.f32.mrb[0].mxu0
      %v355 = vadd.f32 %v241, %v354
      %v356 = vpop.f32.mrb[0].mxu0
      %v357 = vpop.f32.mrb[0].mxu0
      %v358 = vadd.f32 %v242, %v357
      %v359 = vpop.f32.mrb[0].mxu0
      %360 = vdwg.mxu0
      %v361 = vpack.c.bf16 %v358, %v355
      %v364 = vunpack.c.l.b16 %v239
      %v365 = vunpack.c.l.b16 %v240
      %v366 = vpack.c.b16 %v365, %v364
      %v368 = vsel %vm316, %v366, 0
      %370 = vmatprep.subr.bf16.mxu0 0
      %371 = vmatpush1.bf16.msra.mxu0 %v361
      %372 = vmatprep.subr.bf16.mxu0 0
      %373 = vmatpush1.bf16.msra.mxu0 0
      %374 = vmatprep.subr.bf16.mxu0 0
      %375 = vmatpush1.bf16.msra.mxu0 0
      %376 = vmatprep.subr.bf16.mxu0 0
      %377 = vmatpush1.bf16.msra.mxu0 0
      %378 = vmatprep.subr.bf16.mxu0 0
      %379 = vmatpush1.bf16.msra.mxu0 0
      %380 = vmatprep.subr.bf16.mxu0 0
      %381 = vmatpush1.bf16.msra.mxu0 0
      %382 = vmatprep.subr.bf16.mxu0 0
      %383 = vmatpush1.bf16.msra.mxu0 0
      %384 = vmatprep.subr.bf16.mxu0 0
      %385 = vmatpush1.bf16.msra.mxu0 0
      %386 = vmatprep.subr.bf16.mxu0 0
      %387 = vmatpush1.bf16.msra.mxu0 0
      %388 = vmatprep.subr.bf16.mxu0 0
      %389 = vmatpush1.bf16.msra.mxu0 0
      %390 = vmatprep.subr.bf16.mxu0 0
      %391 = vmatpush1.bf16.msra.mxu0 0
      %392 = vmatprep.subr.bf16.mxu0 0
      %393 = vmatpush1.bf16.msra.mxu0 0
      %394 = vmatprep.subr.bf16.mxu0 0
      %395 = vmatpush1.bf16.msra.mxu0 0
      %396 = vmatprep.subr.bf16.mxu0 0
      %397 = vmatpush1.bf16.msra.mxu0 0
      %398 = vmatprep.subr.bf16.mxu0 0
      %399 = vmatpush1.bf16.msra.mxu0 0
      %400 = vmatprep.subr.bf16.mxu0 0
      %401 = vmatpush1.bf16.msra.mxu0 0
      %402 = vmatprep.mubr.bf16.mxu0 0
      %403 = vmatmul.mubr.bf16.gmra.mrb[0].mxu0 %v368
      %v404 = vpop.f32.mrb[0].mxu0
      %v405 = vadd.f32 0.0, %v404
      %v406 = vpop.f32.mrb[0].mxu0
      %v407 = vpop.f32.mrb[0].mxu0
      %v408 = vadd.f32 0.0, %v407
      %v409 = vpop.f32.mrb[0].mxu0
      %410 = vdwg.mxu0
      %v411 = vpack.c.bf16 %v405, %v405
      %v412 = vpack.c.bf16 %v408, %v408
      %v417 = vunpack.c.l.b16 %v250
      %v418 = vunpack.c.l.b16 %v251
      %v419 = vunpack.c.l.b16 %v252
      %v420 = vunpack.c.l.b16 %v253
      %v421 = vpack.c.b16 %v418, %v417
      %v422 = vpack.c.b16 %v420, %v419
      %vm425 = vcmask 261120
      %v427 = vsel %vm425, %v412, 0
      %429 = vmatprep.subr.bf16.mxu0 0
      %430 = vmatpush1.bf16.msra.mxu0 %v421
      %431 = vmatprep.subr.bf16.mxu0 0
      %432 = vmatpush1.bf16.msra.mxu0 %v422
      %433 = vmatprep.subr.bf16.mxu0 0
      %434 = vmatpush1.bf16.msra.mxu0 0
      %435 = vmatprep.subr.bf16.mxu0 0
      %436 = vmatpush1.bf16.msra.mxu0 0
      %437 = vmatprep.subr.bf16.mxu0 0
      %438 = vmatpush1.bf16.msra.mxu0 0
      %439 = vmatprep.subr.bf16.mxu0 0
      %440 = vmatpush1.bf16.msra.mxu0 0
      %441 = vmatprep.subr.bf16.mxu0 0
      %442 = vmatpush1.bf16.msra.mxu0 0
      %443 = vmatprep.subr.bf16.mxu0 0
      %444 = vmatpush1.bf16.msra.mxu0 0
      %445 = vmatprep.subr.bf16.mxu0 0
      %446 = vmatpush1.bf16.msra.mxu0 0
      %447 = vmatprep.subr.bf16.mxu0 0
      %448 = vmatpush1.bf16.msra.mxu0 0
      %449 = vmatprep.subr.bf16.mxu0 0
      %450 = vmatpush1.bf16.msra.mxu0 0
      %451 = vmatprep.subr.bf16.mxu0 0
      %452 = vmatpush1.bf16.msra.mxu0 0
      %453 = vmatprep.subr.bf16.mxu0 0
      %454 = vmatpush1.bf16.msra.mxu0 0
      %455 = vmatprep.subr.bf16.mxu0 0
      %456 = vmatpush1.bf16.msra.mxu0 0
      %457 = vmatprep.subr.bf16.mxu0 0
      %458 = vmatpush1.bf16.msra.mxu0 0
      %459 = vmatprep.subr.bf16.mxu0 0
      %460 = vmatpush1.bf16.msra.mxu0 0
      %461 = vmatprep.mubr.bf16.mxu0 0
      %462 = vmatmul.mubr.bf16.gmra.mrb[0].mxu0 %v427
      %v463 = vpop.f32.mrb[0].mxu0
      %v464 = vadd.f32 0.0, %v463
      %v465 = vpop.f32.mrb[0].mxu0
      %v466 = vpop.f32.mrb[0].mxu0
      %v467 = vpop.f32.mrb[0].mxu0
      %468 = vdwg.mxu0
      %v473 = vunpack.c.l.b16 %v246
      %v474 = vunpack.c.l.b16 %v247
      %v475 = vunpack.c.l.b16 %v248
      %v476 = vunpack.c.l.b16 %v249
      %v477 = vpack.c.b16 %v474, %v473
      %v478 = vpack.c.b16 %v476, %v475
      %v482 = vsel %vm425, %v411, 0
      %484 = vmatprep.subr.bf16.mxu0 0
      %485 = vmatpush1.bf16.msra.mxu0 %v477
      %486 = vmatprep.subr.bf16.mxu0 0
      %487 = vmatpush1.bf16.msra.mxu0 %v478
      %488 = vmatprep.subr.bf16.mxu0 0
      %489 = vmatpush1.bf16.msra.mxu0 0
      %490 = vmatprep.subr.bf16.mxu0 0
      %491 = vmatpush1.bf16.msra.mxu0 0
      %492 = vmatprep.subr.bf16.mxu0 0
      %493 = vmatpush1.bf16.msra.mxu0 0
      %494 = vmatprep.subr.bf16.mxu0 0
      %495 = vmatpush1.bf16.msra.mxu0 0
      %496 = vmatprep.subr.bf16.mxu0 0
      %497 = vmatpush1.bf16.msra.mxu0 0
      %498 = vmatprep.subr.bf16.mxu0 0
      %499 = vmatpush1.bf16.msra.mxu0 0
      %500 = vmatprep.subr.bf16.mxu0 0
      %501 = vmatpush1.bf16.msra.mxu0 0
      %502 = vmatprep.subr.bf16.mxu0 0
      %503 = vmatpush1.bf16.msra.mxu0 0
      %504 = vmatprep.subr.bf16.mxu0 0
      %505 = vmatpush1.bf16.msra.mxu0 0
      %506 = vmatprep.subr.bf16.mxu0 0
      %507 = vmatpush1.bf16.msra.mxu0 0
      %508 = vmatprep.subr.bf16.mxu0 0
      %509 = vmatpush1.bf16.msra.mxu0 0
      %510 = vmatprep.subr.bf16.mxu0 0
      %511 = vmatpush1.bf16.msra.mxu0 0
      %512 = vmatprep.subr.bf16.mxu0 0
      %513 = vmatpush1.bf16.msra.mxu0 0
      %514 = vmatprep.subr.bf16.mxu0 0
      %515 = vmatpush1.bf16.msra.mxu0 0
      %516 = vmatprep.mubr.bf16.mxu0 0
      %517 = vmatmul.mubr.bf16.gmra.mrb[0].mxu0 %v482
      %v518 = vpop.f32.mrb[0].mxu0
      %v519 = vadd.f32 %v464, %v518
      %v520 = vpop.f32.mrb[0].mxu0
      %v521 = vpop.f32.mrb[0].mxu0
      %v522 = vpop.f32.mrb[0].mxu0
      %523 = vdwg.mxu0
      %v524 = vlaneseq
      %v525 = vshrl.u32 %v524, 7
      %v526 = vsub.s32 0, %v525
      %v527 = vrot.slane %v243, %v526
      %v528 = vadd.f32 %v519, %v527
      %v529 = vmax.f32 %v528, 0.0
      %v530 = vpack.c.bf16 %v529, %v529
      %v531 = vlaneseq
      %v532 = vshrl.u32 %v531, 7
      %v533 = vsub.s32 0, %v532
      %v534 = vrot.slane %v244, %v533
      %v539 = vunpack.c.l.b16 %v254
      %v540 = vunpack.c.l.b16 %v255
      %v541 = vunpack.c.l.b16 %v256
      %v542 = vunpack.c.l.b16 %v257
      %v543 = vpack.c.b16 %v540, %v539
      %v544 = vpack.c.b16 %v542, %v541
      %v548 = vsel %vm425, %v530, 0
      %550 = vmatprep.subr.bf16.mxu0 0
      %551 = vmatpush1.bf16.msra.mxu0 %v543
      %552 = vmatprep.subr.bf16.mxu0 0
      %553 = vmatpush1.bf16.msra.mxu0 %v544
      %554 = vmatprep.subr.bf16.mxu0 0
      %555 = vmatpush1.bf16.msra.mxu0 0
      %556 = vmatprep.subr.bf16.mxu0 0
      %557 = vmatpush1.bf16.msra.mxu0 0
      %558 = vmatprep.subr.bf16.mxu0 0
      %559 = vmatpush1.bf16.msra.mxu0 0
      %560 = vmatprep.subr.bf16.mxu0 0
      %561 = vmatpush1.bf16.msra.mxu0 0
      %562 = vmatprep.subr.bf16.mxu0 0
      %563 = vmatpush1.bf16.msra.mxu0 0
      %564 = vmatprep.subr.bf16.mxu0 0
      %565 = vmatpush1.bf16.msra.mxu0 0
      %566 = vmatprep.subr.bf16.mxu0 0
      %567 = vmatpush1.bf16.msra.mxu0 0
      %568 = vmatprep.subr.bf16.mxu0 0
      %569 = vmatpush1.bf16.msra.mxu0 0
      %570 = vmatprep.subr.bf16.mxu0 0
      %571 = vmatpush1.bf16.msra.mxu0 0
      %572 = vmatprep.subr.bf16.mxu0 0
      %573 = vmatpush1.bf16.msra.mxu0 0
      %574 = vmatprep.subr.bf16.mxu0 0
      %575 = vmatpush1.bf16.msra.mxu0 0
      %576 = vmatprep.subr.bf16.mxu0 0
      %577 = vmatpush1.bf16.msra.mxu0 0
      %578 = vmatprep.subr.bf16.mxu0 0
      %579 = vmatpush1.bf16.msra.mxu0 0
      %580 = vmatprep.subr.bf16.mxu0 0
      %581 = vmatpush1.bf16.msra.mxu0 0
      %582 = vmatprep.mubr.bf16.mxu0 0
      %583 = vmatmul.mubr.bf16.gmra.mrb[0].mxu0 %v548
      %v584 = vpop.f32.mrb[0].mxu0
      %v585 = vadd.f32 %v534, %v584
      %v586 = vpop.f32.mrb[0].mxu0
      %v587 = vpop.f32.mrb[0].mxu0
      %v588 = vpop.f32.mrb[0].mxu0
      %589 = vdwg.mxu0
      %590 = vst [vmem:[%s235] sm:$0xff] %v585
      %p591 = scmp.lt.s32.totalorder %s15, 3
      %s592 = scalar_select %p591, %s15, 3
      %s593 = smul.addr %s592, 8
      %s594 = scalar_lea.vmem %s4, %s593
      // Predicated region
      $region37: #{gcn_forward.1} parent=35 // pred_check
        %p595 = pneg %p132
      $region38: #{gcn_forward.1} parent=35 // pred_check_branch
        %597 = sbr.rel (%p595) target = $region40
      $region39: #{gcn_forward.1} parent=35 // pred_region
        _
      $region40: #{gcn_forward.1} parent=35 // pred_fallthru
        _
    $region36: #{gcn_forward.1} parent=5 // pred_fallthru
      _
    %p598 = scmp.le.s32.totalorder 2, %s10
    // Predicated region
    $region41: #{gcn_forward.1} parent=5 // pred_check
      %p599 = pneg %p598
    $region42: #{gcn_forward.1} parent=5 // pred_check_branch
      %601 = sbr.rel (%p599) target = $region44
    $region43: #{gcn_forward.1} parent=5 // pred_region
      %s602 = ssub.s32 %s10, 2
      // Predicated region
      $region45: #{gcn_forward.1} parent=43 // pred_check
        %p603 = pneg %p138
      $region46: #{gcn_forward.1} parent=43 // pred_check_branch
        %605 = sbr.rel (%p603) target = $region48
      $region47: #{gcn_forward.1} parent=43 // pred_region
        %p606 = scmp.lt.s32.totalorder %s16, 3
        %s607 = scalar_select %p606, %s16, 3
        %s608 = smul.addr %s607, 8
        %s609 = scalar_lea.vmem %s4, %s608
      $region48: #{gcn_forward.1} parent=43 // pred_fallthru
        _
    $region44: #{gcn_forward.1} parent=5 // pred_fallthru
      _
  $region6: #{gcn_forward.1} parent=0 // loop_footer
    %s14 = sadd.s32 1, %s10
  $region7: #{gcn_forward.1} parent=0 // loop_footer_branch
    %9 = sbr.rel target = $region3
  $region8: #{gcn_forward.1} parent=0 // loop_exit
    _

</llo_original>
